<compile_context>
chip_gen: v6e
topology: v6e:2x2x1
jax: 0.10.0
libtpu: 0.0.40
codegen_flags: <defaults>
</compile_context>

<pallas_src>
import functools

import jax
import jax.numpy as jnp
import numpy as np
from jax import lax
from jax.experimental import pallas as pl
from jax.experimental.pallas import tpu as pltpu


def _inverted_residual_kernel(
    x_ref,      # (Nb*H, W*Cin)    lane-packed input rows for Nb images
    w1_ref,     # (W*Cin, W*hid)   block-diag 1x1 expand weight, BN scale folded
    b1_ref,     # (1, W*hid)       folded BN bias (lane-tiled)
    w2_ref,     # (9, W*hid)       depthwise taps, BN scale + column-border masks folded
    b2_ref,     # (1, W*hid)
    w3_ref,     # (W*hid, W*oup)   block-diag 1x1 project weight, BN scale folded
    b3_ref,     # (1, W*oup)
    rup_ref,    # (Nb*H, 1)        {0,1} row mask for dy=-1 taps (0 at h==0)
    rdn_ref,    # (Nb*H, 1)        {0,1} row mask for dy=+1 taps (0 at h==H-1)
    o_ref,      # (Nb*H, W*oup)
    *, hidden, use_res):
  L = x_ref.shape[0]
  WC = w2_ref.shape[1]

  x = x_ref[...]                                              # (L, W*Cin)

  # ---- 1x1 expand conv (+ folded BN bias) + ReLU6 : one MXU matmul ----
  h1 = jnp.dot(x, w1_ref[...], preferred_element_type=jnp.float32)
  h1 = jnp.clip(h1 + b1_ref[...], 0.0, 6.0)                   # (L, WC)

  # ---- 3x3 depthwise conv (pad=1, stride=1): XLU rolls + constant taps ----
  # Column borders are zeroed inside the tap constants; row borders via rup/rdn.
  def tap(i):                      # (1, WC) tap row, broadcast over L rows
    return w2_ref[i:i + 1, :]

  def dw_rows(dy):
    rows = h1 if dy == 0 else pltpu.roll(h1, shift=(-dy) % L, axis=0)
    i = 3 * (dy + 1)
    s = rows * tap(i + 1)                                            # dx = 0
    s = s + pltpu.roll(rows, shift=hidden, axis=1) * tap(i + 0)      # dx = -1
    s = s + pltpu.roll(rows, shift=WC - hidden, axis=1) * tap(i + 2) # dx = +1
    return s

  acc = dw_rows(0) + dw_rows(-1) * rup_ref[...] + dw_rows(1) * rdn_ref[...]
  h2 = jnp.clip(acc + b2_ref[...], 0.0, 6.0)                  # (L, WC)

  # ---- 1x1 project conv (+ folded BN bias), linear bottleneck ----
  h3 = jnp.dot(h2, w3_ref[...], preferred_element_type=jnp.float32) + b3_ref[...]
  if use_res:
    h3 = h3 + x

  o_ref[...] = h3.astype(o_ref.dtype)


def _block_diag(w, W):
  """w: (cin, cout) -> (W*cin, W*cout), W copies of w on the block diagonal."""
  cin, cout = w.shape
  eye = jnp.eye(W, dtype=w.dtype)
  return jnp.einsum("ab,ck->acbk", eye, w).reshape(W * cin, W * cout)


def inverted_residual(x, params, *, stride=1, batch_block=2):
  """x: (N, Cin, H, W) float32 (NCHW, matching the PyTorch module). Returns NCHW."""
  assert stride == 1, "TODO(synk): stride=2 depthwise path not implemented"
  N, Cin, H, W = x.shape
  hidden = params["w1"].shape[1]
  oup = params["w3"].shape[1]
  use_res = (stride == 1) and (Cin == oup)
  Nb = batch_block if (N % batch_block == 0) else 1
  # Guard the O(W^2) block-diagonal weight growth before it blows v7x's 64 MiB VMEM.
  assert W * hidden <= 1024, (
      "TODO(synk): use row-tiled (H*W, C) matmuls for large images")

  # ---- constant weight repacking (folds to constants under jit) ----
  s1, b1 = params["s1"].reshape(-1), params["b1"].reshape(-1)
  s2, b2 = params["s2"].reshape(-1), params["b2"].reshape(-1)
  s3, b3 = params["s3"].reshape(-1), params["b3"].reshape(-1)

  w1b = _block_diag(params["w1"] * s1[None, :], W)            # (W*Cin, W*hidden)
  w3b = _block_diag(params["w3"] * s3[None, :], W)            # (W*hidden, W*oup)

  taps = params["w2"].reshape(9, 1, hidden) * s2[None, None, :]
  taps = jnp.tile(taps, (1, W, 1))                            # (9, W, hidden)
  colmask = jnp.ones((9, W), jnp.float32)
  colmask = colmask.at[jnp.array([0, 3, 6]), 0].set(0.0)      # dx=-1 invalid at w=0
  colmask = colmask.at[jnp.array([2, 5, 8]), W - 1].set(0.0)  # dx=+1 invalid at w=W-1
  w2p = (taps * colmask[:, :, None]).reshape(9, W * hidden)

  b1t = jnp.tile(b1[None, :], (1, W))                         # (1, W*hidden)
  b2t = jnp.tile(b2[None, :], (1, W))
  b3t = jnp.tile(b3[None, :], (1, W))                         # (1, W*oup)

  h_idx = np.arange(Nb * H) % H
  rup = jnp.asarray((h_idx > 0).astype(np.float32)[:, None])      # (Nb*H, 1)
  rdn = jnp.asarray((h_idx < H - 1).astype(np.float32)[:, None])  # (Nb*H, 1)

  # Lane-packed activations: (N*H, W*Cin) slab (NHWC row-major), layout plumbing only.
  x_p = jnp.transpose(x, (0, 2, 3, 1)).reshape(N * H, W * Cin)

  LH, WCin, WC, WO = Nb * H, W * Cin, W * hidden, W * oup
  const_spec = lambda shape: pl.BlockSpec(                    # noqa: E731
      shape, lambda n: (0, 0), pipeline_mode=pl.Buffered(1))

  grid_spec = pltpu.PrefetchScalarGridSpec(
      num_scalar_prefetch=0,
      grid=(N // Nb,),
      in_specs=[
          pl.BlockSpec((LH, WCin), lambda n: (n, 0)),
          const_spec((WCin, WC)),
          const_spec((1, WC)),
          const_spec((9, WC)),
          const_spec((1, WC)),
          const_spec((WC, WO)),
          const_spec((1, WO)),
          const_spec((LH, 1)),
          const_spec((LH, 1)),
      ],
      out_specs=pl.BlockSpec((LH, WO), lambda n: (n, 0)),
  )

  kernel = functools.partial(_inverted_residual_kernel,
                             hidden=hidden, use_res=use_res)
  out = pl.pallas_call(
      kernel,
      out_shape=jax.ShapeDtypeStruct((N * H, WO), x.dtype),
      grid_spec=grid_spec,
      compiler_params=pltpu.CompilerParams(
          dimension_semantics=("parallel",),
          vmem_limit_bytes=32 * 1024 * 1024),
  )(x_p, w1b, b1t, w2p, b2t, w3b, b3t, rup, rdn)

  return jnp.transpose(out.reshape(N, H, W, oup), (0, 3, 1, 2))


def _fold_bn(gamma, beta, mean, var, eps=1e-5):
  scale = gamma / jnp.sqrt(var + eps)
  bias = beta - mean * scale
  return scale, bias


def make_params(key, inp, oup, expand_ratio):
  hidden = int(round(inp * expand_ratio))
  ks = jax.random.split(key, 12)
  w1 = jax.random.normal(ks[0], (inp, hidden), jnp.float32) * 0.2     # 1x1 expand
  w2 = jax.random.normal(ks[1], (3, 3, hidden), jnp.float32) * 0.2    # 3x3 depthwise
  w3 = jax.random.normal(ks[2], (hidden, oup), jnp.float32) * 0.2     # 1x1 project

  def bn(k0, k1, k2, k3, c):
    gamma = 1.0 + 0.1 * jax.random.normal(k0, (c,), jnp.float32)
    beta = 0.1 * jax.random.normal(k1, (c,), jnp.float32)
    mean = 0.1 * jax.random.normal(k2, (c,), jnp.float32)
    var = 0.9 + 0.2 * jax.random.uniform(k3, (c,), jnp.float32)
    return _fold_bn(gamma, beta, mean, var)

  s1, b1 = bn(ks[3], ks[4], ks[5], ks[3], hidden)
  s2, b2 = bn(ks[6], ks[7], ks[8], ks[6], hidden)
  s3, b3 = bn(ks[9], ks[10], ks[11], ks[9], oup)
  return {
      "w1": w1, "s1": s1.reshape(1, hidden), "b1": b1.reshape(1, hidden),
      "w2": w2, "s2": s2.reshape(1, hidden), "b2": b2.reshape(1, hidden),
      "w3": w3, "s3": s3.reshape(1, oup), "b3": b3.reshape(1, oup),
  }


def reference_nchw(x, params):
  """Pure-JAX reference of the InvertedResidual forward pass (NCHW in/out)."""
  N, Cin, H, W = x.shape
  hidden = params["w1"].shape[1]
  oup = params["w3"].shape[1]
  dn = ("NHWC", "HWIO", "NHWC")
  prec = lax.Precision.HIGHEST
  xh = jnp.transpose(x, (0, 2, 3, 1))
  h = lax.conv_general_dilated(xh, params["w1"].reshape(1, 1, Cin, hidden),
                               (1, 1), "VALID", dimension_numbers=dn, precision=prec)
  h = jnp.clip(h * params["s1"] + params["b1"], 0.0, 6.0)
  h = lax.conv_general_dilated(h, params["w2"].reshape(3, 3, 1, hidden),
                               (1, 1), "SAME", dimension_numbers=dn,
                               feature_group_count=hidden, precision=prec)
  h = jnp.clip(h * params["s2"] + params["b2"], 0.0, 6.0)
  h = lax.conv_general_dilated(h, params["w3"].reshape(1, 1, hidden, oup),
                               (1, 1), "VALID", dimension_numbers=dn, precision=prec)
  h = h * params["s3"] + params["b3"]
  if Cin == oup:
    h = h + xh                                   # residual branch (stride 1, inp == oup)
  return jnp.transpose(h, (0, 3, 1, 2))


if __name__ == "__main__":
  key = jax.random.PRNGKey(0)
  kx1, kx2, kp1, kp2 = jax.random.split(key, 4)
  # Tolerance leaves headroom for the MXU's bf16-pass decomposition of f32 dots
  # (the pure-JAX reference runs its convs at Precision.HIGHEST).
  TOL = 5e-3

  # Config 1: residual path (inp == oup == 4, stride 1), batch 4 -> 2 parallel steps.
  N, inp, oup, H, W, expand = 4, 4, 4, 16, 16, 4
  x1 = jax.random.normal(kx1, (N, inp, H, W), jnp.float32)        # NCHW
  p1 = make_params(kp1, inp, oup, expand)
  f1 = jax.jit(lambda v: inverted_residual(v, p1, stride=1))
  out1 = jax.block_until_ready(f1(x1))
  ref1 = jax.block_until_ready(reference_nchw(x1, p1))
  np.testing.assert_allclose(np.asarray(out1), np.asarray(ref1), rtol=TOL, atol=TOL)

  # Config 2: projection-only path (inp != oup, no residual), 128-lane output slab.
  N2, inp2, oup2 = 2, 4, 8
  x2 = jax.random.normal(kx2, (N2, inp2, H, W), jnp.float32)
  p2 = make_params(kp2, inp2, oup2, expand)
  f2 = jax.jit(lambda v: inverted_residual(v, p2, stride=1))
  out2 = jax.block_until_ready(f2(x2))
  ref2 = jax.block_until_ready(reference_nchw(x2, p2))
  np.testing.assert_allclose(np.asarray(out2), np.asarray(ref2), rtol=TOL, atol=TOL)

  print("KERNEL_OK")
</pallas_src>

<mosaic_0001>
module attributes {stable_mosaic.version = 11 : i64} {
  func.func @_inverted_residual_kernel(%arg0: i32, %arg1: memref<32x64xf32, #tpu.memory_space<vmem>>, %arg2: memref<64x256xf32, #tpu.memory_space<vmem>>, %arg3: memref<1x256xf32, #tpu.memory_space<vmem>>, %arg4: memref<9x256xf32, #tpu.memory_space<vmem>>, %arg5: memref<1x256xf32, #tpu.memory_space<vmem>>, %arg6: memref<256x64xf32, #tpu.memory_space<vmem>>, %arg7: memref<1x64xf32, #tpu.memory_space<vmem>>, %arg8: memref<32x1xf32, #tpu.memory_space<vmem>>, %arg9: memref<32x1xf32, #tpu.memory_space<vmem>>, %arg10: memref<32x64xf32, #tpu.memory_space<vmem>>) attributes {dimension_semantics = [#tpu.dimension_semantics<parallel>], iteration_bounds = array<i64: 2>, scalar_prefetch = 0 : i64, scratch_operands = 0 : i64, tpu.core_type = #tpu.core_type<tc>, window_params = [{transform_indices = @transform_0, window_bounds = array<i64: 32, 64>}, {pipeline_mode = #tpu.pipeline_mode<synchronous>, transform_indices = @transform_1, window_bounds = array<i64: 64, 256>}, {pipeline_mode = #tpu.pipeline_mode<synchronous>, transform_indices = @transform_2, window_bounds = array<i64: 1, 256>}, {pipeline_mode = #tpu.pipeline_mode<synchronous>, transform_indices = @transform_3, window_bounds = array<i64: 9, 256>}, {pipeline_mode = #tpu.pipeline_mode<synchronous>, transform_indices = @transform_4, window_bounds = array<i64: 1, 256>}, {pipeline_mode = #tpu.pipeline_mode<synchronous>, transform_indices = @transform_5, window_bounds = array<i64: 256, 64>}, {pipeline_mode = #tpu.pipeline_mode<synchronous>, transform_indices = @transform_6, window_bounds = array<i64: 1, 64>}, {pipeline_mode = #tpu.pipeline_mode<synchronous>, transform_indices = @transform_7, window_bounds = array<i64: 32, 1>}, {pipeline_mode = #tpu.pipeline_mode<synchronous>, transform_indices = @transform_8, window_bounds = array<i64: 32, 1>}, {transform_indices = @transform_9, window_bounds = array<i64: 32, 64>}]} {
    %c0 = arith.constant 0 : index
    %c0_0 = arith.constant 0 : index
    %0 = vector.load %arg1[%c0, %c0_0] : memref<32x64xf32, #tpu.memory_space<vmem>>, vector<32x64xf32>
    %c0_1 = arith.constant 0 : index
    %c0_2 = arith.constant 0 : index
    %1 = vector.load %arg2[%c0_1, %c0_2] : memref<64x256xf32, #tpu.memory_space<vmem>>, vector<64x256xf32>
    %cst = arith.constant dense<0.000000e+00> : vector<32x256xf32>
    %2 = tpu.matmul %0, %1, %cst {dimension_numbers = #tpu.dot_dimension_numbers<[1], [0], [0], [1], [0, 0, 1, 1], [], []>} : vector<32x64xf32>, vector<64x256xf32>, vector<32x256xf32> -> vector<32x256xf32>
    %c0_3 = arith.constant 0 : index
    %c0_4 = arith.constant 0 : index
    %3 = vector.load %arg3[%c0_3, %c0_4] : memref<1x256xf32, #tpu.memory_space<vmem>>, vector<1x256xf32>
    %4 = vector.broadcast %3 : vector<1x256xf32> to vector<32x256xf32>
    %5 = arith.addf %2, %4 : vector<32x256xf32>
    %cst_5 = arith.constant 0.000000e+00 : f32
    %cst_6 = arith.constant 6.000000e+00 : f32
    %6 = vector.broadcast %cst_5 : f32 to vector<32x256xf32>
    %7 = arith.maximumf %6, %5 : vector<32x256xf32>
    %8 = vector.broadcast %cst_6 : f32 to vector<32x256xf32>
    %9 = arith.minimumf %8, %7 : vector<32x256xf32>
    %c4 = arith.constant 4 : index
    %c0_7 = arith.constant 0 : index
    %10 = vector.load %arg4[%c4, %c0_7] : memref<9x256xf32, #tpu.memory_space<vmem>>, vector<1x256xf32>
    %11 = vector.broadcast %10 : vector<1x256xf32> to vector<32x256xf32>
    %12 = arith.mulf %9, %11 : vector<32x256xf32>
    %c16_i32 = arith.constant 16 : i32
    %13 = tpu.dynamic_rotate %9 by %c16_i32 dim 1 : vector<32x256xf32>, i32 -> vector<32x256xf32>
    %c3 = arith.constant 3 : index
    %c0_8 = arith.constant 0 : index
    %14 = vector.load %arg4[%c3, %c0_8] : memref<9x256xf32, #tpu.memory_space<vmem>>, vector<1x256xf32>
    %15 = vector.broadcast %14 : vector<1x256xf32> to vector<32x256xf32>
    %16 = arith.mulf %13, %15 : vector<32x256xf32>
    %17 = arith.addf %12, %16 : vector<32x256xf32>
    %c240_i32 = arith.constant 240 : i32
    %18 = tpu.dynamic_rotate %9 by %c240_i32 dim 1 : vector<32x256xf32>, i32 -> vector<32x256xf32>
    %c5 = arith.constant 5 : index
    %c0_9 = arith.constant 0 : index
    %19 = vector.load %arg4[%c5, %c0_9] : memref<9x256xf32, #tpu.memory_space<vmem>>, vector<1x256xf32>
    %20 = vector.broadcast %19 : vector<1x256xf32> to vector<32x256xf32>
    %21 = arith.mulf %18, %20 : vector<32x256xf32>
    %22 = arith.addf %17, %21 : vector<32x256xf32>
    %c1_i32 = arith.constant 1 : i32
    %23 = tpu.dynamic_rotate %9 by %c1_i32 dim 0 : vector<32x256xf32>, i32 -> vector<32x256xf32>
    %c1 = arith.constant 1 : index
    %c0_10 = arith.constant 0 : index
    %24 = vector.load %arg4[%c1, %c0_10] : memref<9x256xf32, #tpu.memory_space<vmem>>, vector<1x256xf32>
    %25 = vector.broadcast %24 : vector<1x256xf32> to vector<32x256xf32>
    %26 = arith.mulf %23, %25 : vector<32x256xf32>
    %c16_i32_11 = arith.constant 16 : i32
    %27 = tpu.dynamic_rotate %23 by %c16_i32_11 dim 1 : vector<32x256xf32>, i32 -> vector<32x256xf32>
    %c0_12 = arith.constant 0 : index
    %c0_13 = arith.constant 0 : index
    %28 = vector.load %arg4[%c0_12, %c0_13] : memref<9x256xf32, #tpu.memory_space<vmem>>, vector<1x256xf32>
    %29 = vector.broadcast %28 : vector<1x256xf32> to vector<32x256xf32>
    %30 = arith.mulf %27, %29 : vector<32x256xf32>
    %31 = arith.addf %26, %30 : vector<32x256xf32>
    %c240_i32_14 = arith.constant 240 : i32
    %32 = tpu.dynamic_rotate %23 by %c240_i32_14 dim 1 : vector<32x256xf32>, i32 -> vector<32x256xf32>
    %c2 = arith.constant 2 : index
    %c0_15 = arith.constant 0 : index
    %33 = vector.load %arg4[%c2, %c0_15] : memref<9x256xf32, #tpu.memory_space<vmem>>, vector<1x256xf32>
    %34 = vector.broadcast %33 : vector<1x256xf32> to vector<32x256xf32>
    %35 = arith.mulf %32, %34 : vector<32x256xf32>
    %36 = arith.addf %31, %35 : vector<32x256xf32>
    %c0_16 = arith.constant 0 : index
    %c0_17 = arith.constant 0 : index
    %37 = vector.load %arg8[%c0_16, %c0_17] : memref<32x1xf32, #tpu.memory_space<vmem>>, vector<32x1xf32>
    %38 = vector.broadcast %37 : vector<32x1xf32> to vector<32x256xf32>
    %39 = arith.mulf %36, %38 : vector<32x256xf32>
    %40 = arith.addf %22, %39 : vector<32x256xf32>
    %c31_i32 = arith.constant 31 : i32
    %41 = tpu.dynamic_rotate %9 by %c31_i32 dim 0 : vector<32x256xf32>, i32 -> vector<32x256xf32>
    %c7 = arith.constant 7 : index
    %c0_18 = arith.constant 0 : index
    %42 = vector.load %arg4[%c7, %c0_18] : memref<9x256xf32, #tpu.memory_space<vmem>>, vector<1x256xf32>
    %43 = vector.broadcast %42 : vector<1x256xf32> to vector<32x256xf32>
    %44 = arith.mulf %41, %43 : vector<32x256xf32>
    %c16_i32_19 = arith.constant 16 : i32
    %45 = tpu.dynamic_rotate %41 by %c16_i32_19 dim 1 : vector<32x256xf32>, i32 -> vector<32x256xf32>
    %c6 = arith.constant 6 : index
    %c0_20 = arith.constant 0 : index
    %46 = vector.load %arg4[%c6, %c0_20] : memref<9x256xf32, #tpu.memory_space<vmem>>, vector<1x256xf32>
    %47 = vector.broadcast %46 : vector<1x256xf32> to vector<32x256xf32>
    %48 = arith.mulf %45, %47 : vector<32x256xf32>
    %49 = arith.addf %44, %48 : vector<32x256xf32>
    %c240_i32_21 = arith.constant 240 : i32
    %50 = tpu.dynamic_rotate %41 by %c240_i32_21 dim 1 : vector<32x256xf32>, i32 -> vector<32x256xf32>
    %c8 = arith.constant 8 : index
    %c0_22 = arith.constant 0 : index
    %51 = vector.load %arg4[%c8, %c0_22] : memref<9x256xf32, #tpu.memory_space<vmem>>, vector<1x256xf32>
    %52 = vector.broadcast %51 : vector<1x256xf32> to vector<32x256xf32>
    %53 = arith.mulf %50, %52 : vector<32x256xf32>
    %54 = arith.addf %49, %53 : vector<32x256xf32>
    %c0_23 = arith.constant 0 : index
    %c0_24 = arith.constant 0 : index
    %55 = vector.load %arg9[%c0_23, %c0_24] : memref<32x1xf32, #tpu.memory_space<vmem>>, vector<32x1xf32>
    %56 = vector.broadcast %55 : vector<32x1xf32> to vector<32x256xf32>
    %57 = arith.mulf %54, %56 : vector<32x256xf32>
    %58 = arith.addf %40, %57 : vector<32x256xf32>
    %c0_25 = arith.constant 0 : index
    %c0_26 = arith.constant 0 : index
    %59 = vector.load %arg5[%c0_25, %c0_26] : memref<1x256xf32, #tpu.memory_space<vmem>>, vector<1x256xf32>
    %60 = vector.broadcast %59 : vector<1x256xf32> to vector<32x256xf32>
    %61 = arith.addf %58, %60 : vector<32x256xf32>
    %cst_27 = arith.constant 0.000000e+00 : f32
    %cst_28 = arith.constant 6.000000e+00 : f32
    %62 = vector.broadcast %cst_27 : f32 to vector<32x256xf32>
    %63 = arith.maximumf %62, %61 : vector<32x256xf32>
    %64 = vector.broadcast %cst_28 : f32 to vector<32x256xf32>
    %65 = arith.minimumf %64, %63 : vector<32x256xf32>
    %c0_29 = arith.constant 0 : index
    %c0_30 = arith.constant 0 : index
    %66 = vector.load %arg6[%c0_29, %c0_30] : memref<256x64xf32, #tpu.memory_space<vmem>>, vector<256x64xf32>
    %cst_31 = arith.constant dense<0.000000e+00> : vector<32x64xf32>
    %67 = tpu.matmul %65, %66, %cst_31 {dimension_numbers = #tpu.dot_dimension_numbers<[1], [0], [0], [1], [0, 0, 1, 1], [], []>} : vector<32x256xf32>, vector<256x64xf32>, vector<32x64xf32> -> vector<32x64xf32>
    %c0_32 = arith.constant 0 : index
    %c0_33 = arith.constant 0 : index
    %68 = vector.load %arg7[%c0_32, %c0_33] : memref<1x64xf32, #tpu.memory_space<vmem>>, vector<1x64xf32>
    %69 = vector.broadcast %68 : vector<1x64xf32> to vector<32x64xf32>
    %70 = arith.addf %67, %69 : vector<32x64xf32>
    %71 = arith.addf %70, %0 : vector<32x64xf32>
    %c0_34 = arith.constant 0 : index
    %c0_35 = arith.constant 0 : index
    %72 = vector.load %arg10[%c0_34, %c0_35] : memref<32x64xf32, #tpu.memory_space<vmem>>, vector<32x64xf32>
    tpu.vector_store %arg10[%c0_34, %c0_35], %71 {strides = array<i32>} : memref<32x64xf32, #tpu.memory_space<vmem>>, vector<32x64xf32>,
    return
  }
  func.func @transform_0(%arg0: i32) -> (i32, i32) {
    %c0_i32 = arith.constant 0 : i32
    %c0_i32_0 = arith.constant 0 : i32
    return %arg0, %c0_i32 : i32, i32
  }
  func.func @transform_1(%arg0: i32) -> (i32, i32) {
    %c0_i32 = arith.constant 0 : i32
    %c0_i32_0 = arith.constant 0 : i32
    %c0_i32_1 = arith.constant 0 : i32
    return %c0_i32, %c0_i32_0 : i32, i32
  }
  func.func @transform_2(%arg0: i32) -> (i32, i32) {
    %c0_i32 = arith.constant 0 : i32
    %c0_i32_0 = arith.constant 0 : i32
    %c0_i32_1 = arith.constant 0 : i32
    return %c0_i32, %c0_i32_0 : i32, i32
  }
  func.func @transform_3(%arg0: i32) -> (i32, i32) {
    %c0_i32 = arith.constant 0 : i32
    %c0_i32_0 = arith.constant 0 : i32
    %c0_i32_1 = arith.constant 0 : i32
    return %c0_i32, %c0_i32_0 : i32, i32
  }
  func.func @transform_4(%arg0: i32) -> (i32, i32) {
    %c0_i32 = arith.constant 0 : i32
    %c0_i32_0 = arith.constant 0 : i32
    %c0_i32_1 = arith.constant 0 : i32
    return %c0_i32, %c0_i32_0 : i32, i32
  }
  func.func @transform_5(%arg0: i32) -> (i32, i32) {
    %c0_i32 = arith.constant 0 : i32
    %c0_i32_0 = arith.constant 0 : i32
    %c0_i32_1 = arith.constant 0 : i32
    return %c0_i32, %c0_i32_0 : i32, i32
  }
  func.func @transform_6(%arg0: i32) -> (i32, i32) {
    %c0_i32 = arith.constant 0 : i32
    %c0_i32_0 = arith.constant 0 : i32
    %c0_i32_1 = arith.constant 0 : i32
    return %c0_i32, %c0_i32_0 : i32, i32
  }
  func.func @transform_7(%arg0: i32) -> (i32, i32) {
    %c0_i32 = arith.constant 0 : i32
    %c0_i32_0 = arith.constant 0 : i32
    %c0_i32_1 = arith.constant 0 : i32
    return %c0_i32, %c0_i32_0 : i32, i32
  }
  func.func @transform_8(%arg0: i32) -> (i32, i32) {
    %c0_i32 = arith.constant 0 : i32
    %c0_i32_0 = arith.constant 0 : i32
    %c0_i32_1 = arith.constant 0 : i32
    return %c0_i32, %c0_i32_0 : i32, i32
  }
  func.func @transform_9(%arg0: i32) -> (i32, i32) {
    %c0_i32 = arith.constant 0 : i32
    %c0_i32_0 = arith.constant 0 : i32
    return %arg0, %c0_i32 : i32, i32
  }
}

</mosaic_0001>

<llo_original>
// kernel: _lambda_.1
$region0: #{_lambda_.1}
  #allocation0 [shape = 'u32[]', space=smem, size = 0x4, offset = 0x4, fixed_abs, tag = 'smem constant byte address 0x4 - core index']
  #allocation1 [shape = 'u32[144,128]{1,0:T(1,128)}', space=vmem, size = 0x12000, scoped, tag = 'internal scratch']
  %s0 = inlined_call_operand.vmem [shape: f32[64,64], index: 0, kind: input, shape index: {}]
  %s1 = inlined_call_operand.vmem [shape: f32[64,256], index: 1, kind: input, shape index: {}]
  %s2 = inlined_call_operand.vmem [shape: f32[1,256], index: 2, kind: input, shape index: {}]
  %s3 = inlined_call_operand.vmem [shape: f32[9,256], index: 3, kind: input, shape index: {}]
  %s4 = inlined_call_operand.vmem [shape: f32[1,256], index: 4, kind: input, shape index: {}]
  %s5 = inlined_call_operand.vmem [shape: f32[256,64], index: 5, kind: input, shape index: {}]
  %s6 = inlined_call_operand.vmem [shape: f32[1,64], index: 6, kind: input, shape index: {}]
  %s7 = inlined_call_operand.vmem [shape: f32[32,1], index: 7, kind: input, shape index: {}]
  %s8 = inlined_call_operand.vmem [shape: f32[32,1], index: 8, kind: input, shape index: {}]
  %s9 = inlined_call_operand.vmem [shape: f32[64,64], index: 9, kind: output, shape index: {}]
  %s10 = sld [smem:[#allocation0]]
  $region69: #{_lambda_.1} parent=0
    _
  %s12 = ssub.s32 1, %s10
  %s13 = scalar_select 0, %s12, %s10
  loop: start=0, step=1, limit=4
  $region2: #{_lambda_.1} parent=0 // loop_pre_header
    _
  $region3: #{_lambda_.1} parent=0 // loop_header
    %s15 = sphi 0, %s19
    %p16 = scmp.ge.s32.totalorder %s15, 4
    %s25 = sphi 0, %s27
    %s28 = sphi 0, %s25
    %s29 = sphi 0, %s28
    %s45 = sphi 0, %s29
    %s49 = sphi 0, %s49
    %s51 = sphi 0, %s49
    %s52 = sphi 0, %s51
    %s66 = sphi 0, %s52
    %s70 = sphi 0, %s70
    %s72 = sphi 0, %s70
    %s73 = sphi 0, %s72
    %s87 = sphi 0, %s73
    %s91 = sphi 0, %s91
    %s93 = sphi 0, %s91
    %s94 = sphi 0, %s93
    %s108 = sphi 0, %s94
    %s112 = sphi 0, %s112
    %s114 = sphi 0, %s112
    %s115 = sphi 0, %s114
    %s129 = sphi 0, %s115
    %s133 = sphi 0, %s133
    %s135 = sphi 0, %s133
    %s136 = sphi 0, %s135
    %s150 = sphi 0, %s136
    %s154 = sphi 0, %s154
    %s156 = sphi 0, %s154
    %s157 = sphi 0, %s156
    %s171 = sphi 0, %s157
    %s175 = sphi 0, %s175
    %s177 = sphi 0, %s175
    %s178 = sphi 0, %s177
    %s192 = sphi 0, %s178
    %s196 = sphi 0, %s196
    %s198 = sphi 0, %s196
    %s199 = sphi 0, %s198
    %s213 = sphi 0, %s199
    %s219 = sphi 0, %s221
    %s222 = sphi 0, %s219
    %s223 = sphi 0, %s222
    %s239 = sphi 0, %s223
  $region4: #{_lambda_.1} parent=0 // loop_header_branch
    %18 = sbr.rel (%p16) target = $region8
  $region5: #{_lambda_.1} parent=0 // loop_body
    %s20 = ssub.s32 %s15, 1
    %s21 = ssub.s32 %s15, 2
    %s22 = sadd.s32 %s15, 1
    %s23 = ssub.s32 %s15, %s22
    %p24 = scmp.eq.s32.totalorder %s23, 0
    %s26 = sadd.s32 %s25, 1
    %s27 = scalar_select %p24, %s25, %s26
    %p30 = pneg %p24
    %p31 = scmp.eq.s32.totalorder %s15, 1
    %p32 = por %p30, %p31
    %p33 = scmp.ne.s32.totalorder %s25, %s28
    %p34 = scmp.eq.s32.totalorder %s15, 0
    %p35 = por %p33, %p34
    %p36 = scmp.ne.s32.totalorder %s25, %s28
    %p37 = scmp.eq.s32.totalorder %s20, 1
    %p38 = por %p36, %p37
    %p39 = scmp.ne.s32.totalorder %s28, %s29
    %p40 = scmp.eq.s32.totalorder %s20, 0
    %p41 = por %p39, %p40
    %p42 = scmp.ne.s32.totalorder %s28, %s29
    %p43 = scmp.eq.s32.totalorder %s21, 1
    %p44 = por %p42, %p43
    %p46 = scmp.ne.s32.totalorder %s29, %s45
    %p47 = scmp.eq.s32.totalorder %s21, 0
    %p48 = por %p46, %p47
    %s50 = sadd.s32 %s49, 1
    %p53 = scmp.eq.s32.totalorder %s15, 1
    %p54 = scmp.ne.s32.totalorder %s49, %s51
    %p55 = scmp.eq.s32.totalorder %s15, 0
    %p56 = por %p54, %p55
    %p57 = scmp.ne.s32.totalorder %s49, %s51
    %p58 = scmp.eq.s32.totalorder %s20, 1
    %p59 = por %p57, %p58
    %p60 = scmp.ne.s32.totalorder %s51, %s52
    %p61 = scmp.eq.s32.totalorder %s20, 0
    %p62 = por %p60, %p61
    %p63 = scmp.ne.s32.totalorder %s51, %s52
    %p64 = scmp.eq.s32.totalorder %s21, 1
    %p65 = por %p63, %p64
    %p67 = scmp.ne.s32.totalorder %s52, %s66
    %p68 = scmp.eq.s32.totalorder %s21, 0
    %p69 = por %p67, %p68
    %s71 = sadd.s32 %s70, 1
    %p74 = scmp.eq.s32.totalorder %s15, 1
    %p75 = scmp.ne.s32.totalorder %s70, %s72
    %p76 = scmp.eq.s32.totalorder %s15, 0
    %p77 = por %p75, %p76
    %p78 = scmp.ne.s32.totalorder %s70, %s72
    %p79 = scmp.eq.s32.totalorder %s20, 1
    %p80 = por %p78, %p79
    %p81 = scmp.ne.s32.totalorder %s72, %s73
    %p82 = scmp.eq.s32.totalorder %s20, 0
    %p83 = por %p81, %p82
    %p84 = scmp.ne.s32.totalorder %s72, %s73
    %p85 = scmp.eq.s32.totalorder %s21, 1
    %p86 = por %p84, %p85
    %p88 = scmp.ne.s32.totalorder %s73, %s87
    %p89 = scmp.eq.s32.totalorder %s21, 0
    %p90 = por %p88, %p89
    %s92 = sadd.s32 %s91, 1
    %p95 = scmp.eq.s32.totalorder %s15, 1
    %p96 = scmp.ne.s32.totalorder %s91, %s93
    %p97 = scmp.eq.s32.totalorder %s15, 0
    %p98 = por %p96, %p97
    %p99 = scmp.ne.s32.totalorder %s91, %s93
    %p100 = scmp.eq.s32.totalorder %s20, 1
    %p101 = por %p99, %p100
    %p102 = scmp.ne.s32.totalorder %s93, %s94
    %p103 = scmp.eq.s32.totalorder %s20, 0
    %p104 = por %p102, %p103
    %p105 = scmp.ne.s32.totalorder %s93, %s94
    %p106 = scmp.eq.s32.totalorder %s21, 1
    %p107 = por %p105, %p106
    %p109 = scmp.ne.s32.totalorder %s94, %s108
    %p110 = scmp.eq.s32.totalorder %s21, 0
    %p111 = por %p109, %p110
    %s113 = sadd.s32 %s112, 1
    %p116 = scmp.eq.s32.totalorder %s15, 1
    %p117 = scmp.ne.s32.totalorder %s112, %s114
    %p118 = scmp.eq.s32.totalorder %s15, 0
    %p119 = por %p117, %p118
    %p120 = scmp.ne.s32.totalorder %s112, %s114
    %p121 = scmp.eq.s32.totalorder %s20, 1
    %p122 = por %p120, %p121
    %p123 = scmp.ne.s32.totalorder %s114, %s115
    %p124 = scmp.eq.s32.totalorder %s20, 0
    %p125 = por %p123, %p124
    %p126 = scmp.ne.s32.totalorder %s114, %s115
    %p127 = scmp.eq.s32.totalorder %s21, 1
    %p128 = por %p126, %p127
    %p130 = scmp.ne.s32.totalorder %s115, %s129
    %p131 = scmp.eq.s32.totalorder %s21, 0
    %p132 = por %p130, %p131
    %s134 = sadd.s32 %s133, 1
    %p137 = scmp.eq.s32.totalorder %s15, 1
    %p138 = scmp.ne.s32.totalorder %s133, %s135
    %p139 = scmp.eq.s32.totalorder %s15, 0
    %p140 = por %p138, %p139
    %p141 = scmp.ne.s32.totalorder %s133, %s135
    %p142 = scmp.eq.s32.totalorder %s20, 1
    %p143 = por %p141, %p142
    %p144 = scmp.ne.s32.totalorder %s135, %s136
    %p145 = scmp.eq.s32.totalorder %s20, 0
    %p146 = por %p144, %p145
    %p147 = scmp.ne.s32.totalorder %s135, %s136
    %p148 = scmp.eq.s32.totalorder %s21, 1
    %p149 = por %p147, %p148
    %p151 = scmp.ne.s32.totalorder %s136, %s150
    %p152 = scmp.eq.s32.totalorder %s21, 0
    %p153 = por %p151, %p152
    %s155 = sadd.s32 %s154, 1
    %p158 = scmp.eq.s32.totalorder %s15, 1
    %p159 = scmp.ne.s32.totalorder %s154, %s156
    %p160 = scmp.eq.s32.totalorder %s15, 0
    %p161 = por %p159, %p160
    %p162 = scmp.ne.s32.totalorder %s154, %s156
    %p163 = scmp.eq.s32.totalorder %s20, 1
    %p164 = por %p162, %p163
    %p165 = scmp.ne.s32.totalorder %s156, %s157
    %p166 = scmp.eq.s32.totalorder %s20, 0
    %p167 = por %p165, %p166
    %p168 = scmp.ne.s32.totalorder %s156, %s157
    %p169 = scmp.eq.s32.totalorder %s21, 1
    %p170 = por %p168, %p169
    %p172 = scmp.ne.s32.totalorder %s157, %s171
    %p173 = scmp.eq.s32.totalorder %s21, 0
    %p174 = por %p172, %p173
    %s176 = sadd.s32 %s175, 1
    %p179 = scmp.eq.s32.totalorder %s15, 1
    %p180 = scmp.ne.s32.totalorder %s175, %s177
    %p181 = scmp.eq.s32.totalorder %s15, 0
    %p182 = por %p180, %p181
    %p183 = scmp.ne.s32.totalorder %s175, %s177
    %p184 = scmp.eq.s32.totalorder %s20, 1
    %p185 = por %p183, %p184
    %p186 = scmp.ne.s32.totalorder %s177, %s178
    %p187 = scmp.eq.s32.totalorder %s20, 0
    %p188 = por %p186, %p187
    %p189 = scmp.ne.s32.totalorder %s177, %s178
    %p190 = scmp.eq.s32.totalorder %s21, 1
    %p191 = por %p189, %p190
    %p193 = scmp.ne.s32.totalorder %s178, %s192
    %p194 = scmp.eq.s32.totalorder %s21, 0
    %p195 = por %p193, %p194
    %s197 = sadd.s32 %s196, 1
    %p200 = scmp.eq.s32.totalorder %s15, 1
    %p201 = scmp.ne.s32.totalorder %s196, %s198
    %p202 = scmp.eq.s32.totalorder %s15, 0
    %p203 = por %p201, %p202
    %p204 = scmp.ne.s32.totalorder %s196, %s198
    %p205 = scmp.eq.s32.totalorder %s20, 1
    %p206 = por %p204, %p205
    %p207 = scmp.ne.s32.totalorder %s198, %s199
    %p208 = scmp.eq.s32.totalorder %s20, 0
    %p209 = por %p207, %p208
    %p210 = scmp.ne.s32.totalorder %s198, %s199
    %p211 = scmp.eq.s32.totalorder %s21, 1
    %p212 = por %p210, %p211
    %p214 = scmp.ne.s32.totalorder %s199, %s213
    %p215 = scmp.eq.s32.totalorder %s21, 0
    %p216 = por %p214, %p215
    %s217 = ssub.s32 %s15, %s22
    %p218 = scmp.eq.s32.totalorder %s217, 0
    %s220 = sadd.s32 %s219, 1
    %s221 = scalar_select %p218, %s219, %s220
    %p224 = pneg %p218
    %p225 = scmp.eq.s32.totalorder %s15, 1
    %p226 = por %p224, %p225
    %p227 = scmp.ne.s32.totalorder %s219, %s222
    %p228 = scmp.eq.s32.totalorder %s15, 0
    %p229 = por %p227, %p228
    %p230 = scmp.ne.s32.totalorder %s219, %s222
    %p231 = scmp.eq.s32.totalorder %s20, 1
    %p232 = por %p230, %p231
    %p233 = scmp.ne.s32.totalorder %s222, %s223
    %p234 = scmp.eq.s32.totalorder %s20, 0
    %p235 = por %p233, %p234
    %p236 = scmp.ne.s32.totalorder %s222, %s223
    %p237 = scmp.eq.s32.totalorder %s21, 1
    %p238 = por %p236, %p237
    %p240 = scmp.ne.s32.totalorder %s223, %s239
    %p241 = scmp.eq.s32.totalorder %s21, 0
    %p242 = por %p240, %p241
    %p243 = scmp.le.s32.totalorder 1, %s15
    %p244 = scmp.lt.s32.totalorder %s15, 3
    %p245 = pnand %p243, %p244
    %p246 = pneg %p245
    // Predicated region
    $region9: #{_lambda_.1} parent=5 // pred_check
      _
    $region10: #{_lambda_.1} parent=5 // pred_check_branch
      %248 = sbr.rel (%p245) target = $region12
    $region11: #{_lambda_.1} parent=5 // pred_region
      %s249 = ssub.s32 %s15, 1
      // Predicated region
      $region13: #{_lambda_.1} parent=11 // pred_check
        %p250 = pneg %p62
      $region14: #{_lambda_.1} parent=11 // pred_check_branch
        %252 = sbr.rel (%p250) target = $region16
      $region15: #{_lambda_.1} parent=11 // pred_region
        _
      $region16: #{_lambda_.1} parent=11 // pred_fallthru
        _
      // Predicated region
      $region17: #{_lambda_.1} parent=11 // pred_check
        %p253 = pneg %p83
      $region18: #{_lambda_.1} parent=11 // pred_check_branch
        %255 = sbr.rel (%p253) target = $region20
      $region19: #{_lambda_.1} parent=11 // pred_region
        _
      $region20: #{_lambda_.1} parent=11 // pred_fallthru
        _
      // Predicated region
      $region21: #{_lambda_.1} parent=11 // pred_check
        %p256 = pneg %p104
      $region22: #{_lambda_.1} parent=11 // pred_check_branch
        %258 = sbr.rel (%p256) target = $region24
      $region23: #{_lambda_.1} parent=11 // pred_region
        _
      $region24: #{_lambda_.1} parent=11 // pred_fallthru
        _
      // Predicated region
      $region25: #{_lambda_.1} parent=11 // pred_check
        %p259 = pneg %p125
      $region26: #{_lambda_.1} parent=11 // pred_check_branch
        %261 = sbr.rel (%p259) target = $region28
      $region27: #{_lambda_.1} parent=11 // pred_region
        _
      $region28: #{_lambda_.1} parent=11 // pred_fallthru
        _
      // Predicated region
      $region29: #{_lambda_.1} parent=11 // pred_check
        %p262 = pneg %p146
      $region30: #{_lambda_.1} parent=11 // pred_check_branch
        %264 = sbr.rel (%p262) target = $region32
      $region31: #{_lambda_.1} parent=11 // pred_region
        _
      $region32: #{_lambda_.1} parent=11 // pred_fallthru
        _
      // Predicated region
      $region33: #{_lambda_.1} parent=11 // pred_check
        %p265 = pneg %p167
      $region34: #{_lambda_.1} parent=11 // pred_check_branch
        %267 = sbr.rel (%p265) target = $region36
      $region35: #{_lambda_.1} parent=11 // pred_region
        _
      $region36: #{_lambda_.1} parent=11 // pred_fallthru
        _
      // Predicated region
      $region37: #{_lambda_.1} parent=11 // pred_check
        %p268 = pneg %p188
      $region38: #{_lambda_.1} parent=11 // pred_check_branch
        %270 = sbr.rel (%p268) target = $region40
      $region39: #{_lambda_.1} parent=11 // pred_region
        _
      $region40: #{_lambda_.1} parent=11 // pred_fallthru
        _
      // Predicated region
      $region41: #{_lambda_.1} parent=11 // pred_check
        %p271 = pneg %p209
      $region42: #{_lambda_.1} parent=11 // pred_check_branch
        %273 = sbr.rel (%p271) target = $region44
      $region43: #{_lambda_.1} parent=11 // pred_region
        _
      $region44: #{_lambda_.1} parent=11 // pred_fallthru
        _
    $region12: #{_lambda_.1} parent=5 // pred_fallthru
      _
    %p274 = scmp.lt.s32.totalorder %s15, 2
    // Predicated region
    $region45: #{_lambda_.1} parent=5 // pred_check
      %p275 = pneg %p274
    $region46: #{_lambda_.1} parent=5 // pred_check_branch
      %277 = sbr.rel (%p275) target = $region48
    $region47: #{_lambda_.1} parent=5 // pred_region
      // Predicated region
      $region49: #{_lambda_.1} parent=47 // pred_check
        %p278 = pneg %p35
      $region50: #{_lambda_.1} parent=47 // pred_check_branch
        %280 = sbr.rel (%p278) target = $region52
      $region51: #{_lambda_.1} parent=47 // pred_region
        %s281 = smul.u32 4, %s15
        %p282 = scmp.lt.s32.totalorder %s281, 7
        %s283 = scalar_select %p282, %s281, 7
        %s284 = smul.addr %s283, 8
        %s285 = scalar_lea.vmem %s0, %s284
        %s286 = smul.u32 4, %s15
      $region52: #{_lambda_.1} parent=47 // pred_fallthru
        _
    $region48: #{_lambda_.1} parent=5 // pred_fallthru
      _
    %p287 = scmp.le.s32.totalorder 1, %s15
    %p288 = scmp.lt.s32.totalorder %s15, 3
    %p289 = pnand %p287, %p288
    %p290 = pneg %p289
    // Predicated region
    $region53: #{_lambda_.1} parent=5 // pred_check
      _
    $region54: #{_lambda_.1} parent=5 // pred_check_branch
      %292 = sbr.rel (%p289) target = $region56
    $region55: #{_lambda_.1} parent=5 // pred_region
      %s293 = ssub.s32 %s15, 1
      %s294 = smul.u32 4, %s20
      %p295 = scmp.lt.s32.totalorder %s294, 7
      %s296 = scalar_select %p295, %s294, 7
      %s297 = smul.addr %s296, 8
      %s298 = scalar_lea.vmem %s0, %s297
      %p299 = pneg %p41
      %p300 = pneg %p38
      %p301 = pneg %p62
      %p302 = pneg %p59
      %p303 = pneg %p83
      %p304 = pneg %p80
      %p305 = pneg %p104
      %p306 = pneg %p101
      %p307 = pneg %p125
      %p308 = pneg %p122
      %p309 = pneg %p146
      %p310 = pneg %p143
      %p311 = pneg %p167
      %p312 = pneg %p164
      %p313 = pneg %p188
      %p314 = pneg %p185
      %p315 = pneg %p209
      %p316 = pneg %p206
      %p317 = pneg %p235
      %p318 = pneg %p232
      %s319 = smul.u32 4, %s20
      %p320 = scmp.lt.s32.totalorder %s319, 7
      %s321 = scalar_select %p320, %s319, 7
      %s322 = smul.addr %s321, 8
      %s323 = scalar_lea.vmem %s9, %s322
      %s324 = smul.u32 4, %s20
      %p325 = scmp.lt.s32.totalorder %s324, 7
      %s326 = scalar_select %p325, %s324, 7
      %s327 = smul.addr %s326, 8
      %s328 = scalar_lea.vmem %s0, %s327
      %s329 = smul.u32 4, %s20
      %s330 = smul.u32 4, %s20
      %p331 = scmp.lt.s32.totalorder %s330, 7
      %s332 = scalar_select %p331, %s330, 7
      %s333 = smul.addr %s332, 8
      %s334 = scalar_lea.vmem %s9, %s333
      %s335 = smul.u32 4, %s20
      %v336 = vld [vmem:[%s328] sm:$0xff]
      %v337 = vld [vmem:[%s328 + $0x8] sm:$0xff]
      %v338 = vld [vmem:[%s328 + $0x10] sm:$0xff]
      %v339 = vld [vmem:[%s328 + $0x18] sm:$0xff]
      %v340 = vld [vmem:[%s1] sm:$0xff]
      %v341 = vld [vmem:[%s1 + $0x8] sm:$0xff]
      %v342 = vld [vmem:[%s1 + $0x10] sm:$0xff]
      %v343 = vld [vmem:[%s1 + $0x18] sm:$0xff]
      %v344 = vld [vmem:[%s1 + $0x20] sm:$0xff]
      %v345 = vld [vmem:[%s1 + $0x28] sm:$0xff]
      %v346 = vld [vmem:[%s1 + $0x30] sm:$0xff]
      %v347 = vld [vmem:[%s1 + $0x38] sm:$0xff]
      %v348 = vld [vmem:[%s1 + $0x40] sm:$0xff]
      %v349 = vld [vmem:[%s1 + $0x48] sm:$0xff]
      %v350 = vld [vmem:[%s1 + $0x50] sm:$0xff]
      %v351 = vld [vmem:[%s1 + $0x58] sm:$0xff]
      %v352 = vld [vmem:[%s1 + $0x60] sm:$0xff]
      %v353 = vld [vmem:[%s1 + $0x68] sm:$0xff]
      %v354 = vld [vmem:[%s1 + $0x70] sm:$0xff]
      %v355 = vld [vmem:[%s1 + $0x78] sm:$0xff]
      %v356 = vld [vmem:[%s2] sm:$0x3]
      %v358 = vlaneseq
      %v359 = vshrl.u32 %v358, 7
      %v360 = vsub.s32 0, %v359
      %v361 = vrot.slane %v356, %v360
      %v362 = vlaneseq
      %v363 = vshrl.u32 %v362, 7
      %v364 = vsub.s32 1, %v363
      %v365 = vrot.slane %v356, %v364
      %vm368 = vcmask 523264
      %v370 = vsel %vm368, %v336, 0
      %v373 = vsel %vm368, %v337, 0
      %v376 = vsel %vm368, %v338, 0
      %v379 = vsel %vm368, %v339, 0
      %381 = vmatprep.subr.mxu0 0.0
      %382 = vmatpush1.msra.mxu0 0.0
      %383 = vmatprep.subr.mxu0 0.0
      %384 = vmatpush1.msra.mxu0 0.0
      %385 = vmatprep.subr.mxu0 0.0
      %386 = vmatpush1.msra.mxu0 0.0
      %387 = vmatprep.subr.mxu0 0.0
      %388 = vmatpush1.msra.mxu0 0.0
      %389 = vmatprep.subr.mxu0 0.0
      %390 = vmatpush1.msra.mxu0 0.0
      %391 = vmatprep.subr.mxu0 0.0
      %392 = vmatpush1.msra.mxu0 0.0
      %393 = vmatprep.subr.mxu0 0.0
      %394 = vmatpush1.msra.mxu0 0.0
      %395 = vmatprep.subr.mxu0 0.0
      %396 = vmatpush1.msra.mxu0 0.0
      %397 = vmatprep.subr.mxu0 %v355
      %398 = vmatpush1.msra.mxu0 %v354
      %399 = vmatprep.subr.mxu0 %v353
      %400 = vmatpush1.msra.mxu0 %v352
      %401 = vmatprep.subr.mxu0 %v351
      %402 = vmatpush1.msra.mxu0 %v350
      %403 = vmatprep.subr.mxu0 %v349
      %404 = vmatpush1.msra.mxu0 %v348
      %405 = vmatprep.subr.mxu0 %v347
      %406 = vmatpush1.msra.mxu0 %v346
      %407 = vmatprep.subr.mxu0 %v345
      %408 = vmatpush1.msra.mxu0 %v344
      %409 = vmatprep.subr.mxu0 %v343
      %410 = vmatpush1.msra.mxu0 %v342
      %411 = vmatprep.subr.mxu0 %v341
      %412 = vmatpush1.msra.mxu0 %v340
      %413 = vmatprep.subr.mxu0 0.0
      %414 = vmatpush2.msra.mxu0 0.0
      %415 = vmatprep.subr.mxu0 0.0
      %416 = vmatpush2.msra.mxu0 0.0
      %417 = vmatprep.subr.mxu0 0.0
      %418 = vmatpush2.msra.mxu0 0.0
      %419 = vmatprep.subr.mxu0 0.0
      %420 = vmatpush2.msra.mxu0 0.0
      %421 = vmatprep.subr.mxu0 0.0
      %422 = vmatpush2.msra.mxu0 0.0
      %423 = vmatprep.subr.mxu0 0.0
      %424 = vmatpush2.msra.mxu0 0.0
      %425 = vmatprep.subr.mxu0 0.0
      %426 = vmatpush2.msra.mxu0 0.0
      %427 = vmatprep.subr.mxu0 0.0
      %428 = vmatpush2.msra.mxu0 0.0
      %429 = vmatprep.subr.mxu0 0.0
      %430 = vmatpush2.msra.mxu0 0.0
      %431 = vmatprep.subr.mxu0 0.0
      %432 = vmatpush2.msra.mxu0 0.0
      %433 = vmatprep.subr.mxu0 0.0
      %434 = vmatpush2.msra.mxu0 0.0
      %435 = vmatprep.subr.mxu0 0.0
      %436 = vmatpush2.msra.mxu0 0.0
      %437 = vmatprep.subr.mxu0 0.0
      %438 = vmatpush2.msra.mxu0 0.0
      %439 = vmatprep.subr.mxu0 0.0
      %440 = vmatpush2.msra.mxu0 0.0
      %441 = vmatprep.subr.mxu0 0.0
      %442 = vmatpush2.msra.mxu0 0.0
      %443 = vmatprep.subr.mxu0 0.0
      %444 = vmatpush2.msra.mxu0 0.0
      %445 = vmatprep.mubr.f32.mxu0 0.0
      %446 = vmatmul.mubr.f32.gmra.mxu0 %v370
      %v447 = vpop.f32.mrf.mxu0
      %v448 = vadd.f32 %v361, %v447
      %v449 = vpop.f32.mrf.mxu0
      %v450 = vadd.f32 %v365, %v449
      %451 = vmatprep.mubr.f32.mxu0 0.0
      %452 = vmatmul.mubr.f32.gmra.mxu0 %v373
      %v453 = vpop.f32.mrf.mxu0
      %v454 = vadd.f32 %v361, %v453
      %v455 = vpop.f32.mrf.mxu0
      %v456 = vadd.f32 %v365, %v455
      %457 = vmatprep.mubr.f32.mxu0 0.0
      %458 = vmatmul.mubr.f32.gmra.mxu0 %v376
      %v459 = vpop.f32.mrf.mxu0
      %v460 = vadd.f32 %v361, %v459
      %v461 = vpop.f32.mrf.mxu0
      %v462 = vadd.f32 %v365, %v461
      %463 = vmatprep.mubr.f32.mxu0 0.0
      %464 = vmatmul.mubr.f32.gmra.mxu0 %v379
      %v465 = vpop.f32.mrf.mxu0
      %v466 = vadd.f32 %v361, %v465
      %v467 = vpop.f32.mrf.mxu0
      %v468 = vadd.f32 %v365, %v467
      %469 = vdwg.mxu0
      %v470 = vmax.f32 %v448, 0.0
      %v471 = vmax.f32 %v450, 0.0
      %v472 = vmax.f32 %v454, 0.0
      %v473 = vmax.f32 %v456, 0.0
      %v474 = vmax.f32 %v460, 0.0
      %v475 = vmax.f32 %v462, 0.0
      %v476 = vmax.f32 %v466, 0.0
      %v477 = vmax.f32 %v468, 0.0
      %v478 = vmin.f32 %v470, 6.0
      %v479 = vmin.f32 %v471, 6.0
      %v480 = vmin.f32 %v472, 6.0
      %v481 = vmin.f32 %v473, 6.0
      %v482 = vmin.f32 %v474, 6.0
      %v483 = vmin.f32 %v475, 6.0
      %v484 = vmin.f32 %v476, 6.0
      %v485 = vmin.f32 %v477, 6.0
      %s486 = scalar_lea.vmem %s3, 4
      %v487 = vld [vmem:[%s486] ss:$8 sm:$0x3]
      %v489 = vlaneseq
      %v490 = vshrl.u32 %v489, 7
      %v491 = vsub.s32 0, %v490
      %v492 = vrot.slane %v487, %v491
      %v493 = vlaneseq
      %v494 = vshrl.u32 %v493, 7
      %v495 = vsub.s32 1, %v494
      %v496 = vrot.slane %v487, %v495
      %v499 = vmul.f32 %v478, %v492
      %v500 = vmul.f32 %v479, %v496
      %v501 = vmul.f32 %v480, %v492
      %v502 = vmul.f32 %v481, %v496
      %v503 = vmul.f32 %v482, %v492
      %v504 = vmul.f32 %v483, %v496
      %v505 = vmul.f32 %v484, %v492
      %v506 = vmul.f32 %v485, %v496
      %507 = vrot.lane.b32.xlu0 %v478, 16
      %v508 = vpop.permute.xlu0 %507
      %509 = vrot.lane.b32.xlu0 %v480, 16
      %v510 = vpop.permute.xlu0 %509
      %511 = vrot.lane.b32.xlu0 %v482, 16
      %v512 = vpop.permute.xlu0 %511
      %513 = vrot.lane.b32.xlu0 %v484, 16
      %v514 = vpop.permute.xlu0 %513
      %515 = vrot.lane.b32.xlu0 %v479, 16
      %v516 = vpop.permute.xlu0 %515
      %517 = vrot.lane.b32.xlu0 %v481, 16
      %v518 = vpop.permute.xlu0 %517
      %519 = vrot.lane.b32.xlu0 %v483, 16
      %v520 = vpop.permute.xlu0 %519
      %521 = vrot.lane.b32.xlu0 %v485, 16
      %v522 = vpop.permute.xlu0 %521
      %v523 = vlaneseq
      %v524 = vand.u32 %v523, 127
      %vm525 = vcmp.lt.s32.totalorder %v524, 16
      %v526 = vsel %vm525, %v508, %v516
      %v527 = vsel %vm525, %v510, %v518
      %v528 = vsel %vm525, %v512, %v520
      %v529 = vsel %vm525, %v514, %v522
      %v530 = vsel %vm525, %v516, %v508
      %v531 = vsel %vm525, %v518, %v510
      %v532 = vsel %vm525, %v520, %v512
      %v533 = vsel %vm525, %v522, %v514
      %s534 = scalar_lea.vmem %s3, 3
      %v535 = vld [vmem:[%s534] ss:$8 sm:$0x3]
      %v537 = vlaneseq
      %v538 = vshrl.u32 %v537, 7
      %v539 = vsub.s32 0, %v538
      %v540 = vrot.slane %v535, %v539
      %v541 = vlaneseq
      %v542 = vshrl.u32 %v541, 7
      %v543 = vsub.s32 1, %v542
      %v544 = vrot.slane %v535, %v543
      %v547 = vmul.f32 %v530, %v540
      %v548 = vmul.f32 %v526, %v544
      %v549 = vmul.f32 %v531, %v540
      %v550 = vmul.f32 %v527, %v544
      %v551 = vmul.f32 %v532, %v540
      %v552 = vmul.f32 %v528, %v544
      %v553 = vmul.f32 %v533, %v540
      %v554 = vmul.f32 %v529, %v544
      %v555 = vadd.f32 %v499, %v547
      %v556 = vadd.f32 %v500, %v548
      %v557 = vadd.f32 %v501, %v549
      %v558 = vadd.f32 %v502, %v550
      %v559 = vadd.f32 %v503, %v551
      %v560 = vadd.f32 %v504, %v552
      %v561 = vadd.f32 %v505, %v553
      %v562 = vadd.f32 %v506, %v554
      %563 = vrot.lane.b32.xlu0 %v478, 112
      %v564 = vpop.permute.xlu0 %563
      %565 = vrot.lane.b32.xlu0 %v480, 112
      %v566 = vpop.permute.xlu0 %565
      %567 = vrot.lane.b32.xlu0 %v482, 112
      %v568 = vpop.permute.xlu0 %567
      %569 = vrot.lane.b32.xlu0 %v484, 112
      %v570 = vpop.permute.xlu0 %569
      %571 = vrot.lane.b32.xlu0 %v479, 112
      %v572 = vpop.permute.xlu0 %571
      %573 = vrot.lane.b32.xlu0 %v481, 112
      %v574 = vpop.permute.xlu0 %573
      %575 = vrot.lane.b32.xlu0 %v483, 112
      %v576 = vpop.permute.xlu0 %575
      %577 = vrot.lane.b32.xlu0 %v485, 112
      %v578 = vpop.permute.xlu0 %577
      %vm579 = vcmp.lt.s32.totalorder %v524, 112
      %v580 = vsel %vm579, %v564, %v572
      %v581 = vsel %vm579, %v566, %v574
      %v582 = vsel %vm579, %v568, %v576
      %v583 = vsel %vm579, %v570, %v578
      %v584 = vsel %vm579, %v572, %v564
      %v585 = vsel %vm579, %v574, %v566
      %v586 = vsel %vm579, %v576, %v568
      %v587 = vsel %vm579, %v578, %v570
      %s588 = scalar_lea.vmem %s3, 5
      %v589 = vld [vmem:[%s588] ss:$8 sm:$0x3]
      %v591 = vlaneseq
      %v592 = vshrl.u32 %v591, 7
      %v593 = vsub.s32 0, %v592
      %v594 = vrot.slane %v589, %v593
      %v595 = vlaneseq
      %v596 = vshrl.u32 %v595, 7
      %v597 = vsub.s32 1, %v596
      %v598 = vrot.slane %v589, %v597
      %v601 = vmul.f32 %v580, %v594
      %v602 = vmul.f32 %v584, %v598
      %v603 = vmul.f32 %v581, %v594
      %v604 = vmul.f32 %v585, %v598
      %v605 = vmul.f32 %v582, %v594
      %v606 = vmul.f32 %v586, %v598
      %v607 = vmul.f32 %v583, %v594
      %v608 = vmul.f32 %v587, %v598
      %v609 = vadd.f32 %v555, %v601
      %v610 = vadd.f32 %v556, %v602
      %v611 = vadd.f32 %v557, %v603
      %v612 = vadd.f32 %v558, %v604
      %v613 = vadd.f32 %v559, %v605
      %v614 = vadd.f32 %v560, %v606
      %v615 = vadd.f32 %v561, %v607
      %v616 = vadd.f32 %v562, %v608
      %v617 = vrot.slane %v478, 7
      %v618 = vrot.slane %v479, 7
      %v619 = vrot.slane %v480, 7
      %v620 = vrot.slane %v481, 7
      %v621 = vrot.slane %v482, 7
      %v622 = vrot.slane %v483, 7
      %v623 = vrot.slane %v484, 7
      %v624 = vrot.slane %v485, 7
      %v625 = vlaneseq
      %v626 = vshrl.u32 %v625, 7
      %vm627 = vcmp.lt.s32.totalorder %v626, 1
      %v628 = vsel %vm627, %v621, %v623
      %v629 = vsel %vm627, %v622, %v624
      %v630 = vsel %vm627, %v619, %v621
      %v631 = vsel %vm627, %v620, %v622
      %v632 = vsel %vm627, %v617, %v619
      %v633 = vsel %vm627, %v618, %v620
      %v634 = vsel %vm627, %v623, %v617
      %v635 = vsel %vm627, %v624, %v618
      %s636 = scalar_lea.vmem %s3, 1
      %v637 = vld [vmem:[%s636] ss:$8 sm:$0x3]
      %v639 = vlaneseq
      %v640 = vshrl.u32 %v639, 7
      %v641 = vsub.s32 0, %v640
      %v642 = vrot.slane %v637, %v641
      %v643 = vlaneseq
      %v644 = vshrl.u32 %v643, 7
      %v645 = vsub.s32 1, %v644
      %v646 = vrot.slane %v637, %v645
      %v649 = vmul.f32 %v634, %v642
      %v650 = vmul.f32 %v635, %v646
      %v651 = vmul.f32 %v632, %v642
      %v652 = vmul.f32 %v633, %v646
      %v653 = vmul.f32 %v630, %v642
      %v654 = vmul.f32 %v631, %v646
      %v655 = vmul.f32 %v628, %v642
      %v656 = vmul.f32 %v629, %v646
      %657 = vrot.lane.b32.xlu0 %v634, 16
      %v658 = vpop.permute.xlu0 %657
      %659 = vrot.lane.b32.xlu0 %v632, 16
      %v660 = vpop.permute.xlu0 %659
      %661 = vrot.lane.b32.xlu0 %v630, 16
      %v662 = vpop.permute.xlu0 %661
      %663 = vrot.lane.b32.xlu0 %v628, 16
      %v664 = vpop.permute.xlu0 %663
      %665 = vrot.lane.b32.xlu0 %v635, 16
      %v666 = vpop.permute.xlu0 %665
      %667 = vrot.lane.b32.xlu0 %v633, 16
      %v668 = vpop.permute.xlu0 %667
      %669 = vrot.lane.b32.xlu0 %v631, 16
      %v670 = vpop.permute.xlu0 %669
      %671 = vrot.lane.b32.xlu0 %v629, 16
      %v672 = vpop.permute.xlu0 %671
      %v673 = vsel %vm525, %v658, %v666
      %v674 = vsel %vm525, %v660, %v668
      %v675 = vsel %vm525, %v662, %v670
      %v676 = vsel %vm525, %v664, %v672
      %v677 = vsel %vm525, %v666, %v658
      %v678 = vsel %vm525, %v668, %v660
      %v679 = vsel %vm525, %v670, %v662
      %v680 = vsel %vm525, %v672, %v664
      %v681 = vld [vmem:[%s3] ss:$8 sm:$0x3]
      %v683 = vlaneseq
      %v684 = vshrl.u32 %v683, 7
      %v685 = vsub.s32 0, %v684
      %v686 = vrot.slane %v681, %v685
      %v687 = vlaneseq
      %v688 = vshrl.u32 %v687, 7
      %v689 = vsub.s32 1, %v688
      %v690 = vrot.slane %v681, %v689
      %v693 = vmul.f32 %v677, %v686
      %v694 = vmul.f32 %v673, %v690
      %v695 = vmul.f32 %v678, %v686
      %v696 = vmul.f32 %v674, %v690
      %v697 = vmul.f32 %v679, %v686
      %v698 = vmul.f32 %v675, %v690
      %v699 = vmul.f32 %v680, %v686
      %v700 = vmul.f32 %v676, %v690
      %v701 = vadd.f32 %v649, %v693
      %v702 = vadd.f32 %v650, %v694
      %v703 = vadd.f32 %v651, %v695
      %v704 = vadd.f32 %v652, %v696
      %v705 = vadd.f32 %v653, %v697
      %v706 = vadd.f32 %v654, %v698
      %v707 = vadd.f32 %v655, %v699
      %v708 = vadd.f32 %v656, %v700
      %709 = vrot.lane.b32.xlu0 %v634, 112
      %v710 = vpop.permute.xlu0 %709
      %711 = vrot.lane.b32.xlu0 %v632, 112
      %v712 = vpop.permute.xlu0 %711
      %713 = vrot.lane.b32.xlu0 %v630, 112
      %v714 = vpop.permute.xlu0 %713
      %715 = vrot.lane.b32.xlu0 %v628, 112
      %v716 = vpop.permute.xlu0 %715
      %717 = vrot.lane.b32.xlu0 %v635, 112
      %v718 = vpop.permute.xlu0 %717
      %719 = vrot.lane.b32.xlu0 %v633, 112
      %v720 = vpop.permute.xlu0 %719
      %721 = vrot.lane.b32.xlu0 %v631, 112
      %v722 = vpop.permute.xlu0 %721
      %723 = vrot.lane.b32.xlu0 %v629, 112
      %v724 = vpop.permute.xlu0 %723
      %v725 = vsel %vm579, %v710, %v718
      %v726 = vsel %vm579, %v712, %v720
      %v727 = vsel %vm579, %v714, %v722
      %v728 = vsel %vm579, %v716, %v724
      %v729 = vsel %vm579, %v718, %v710
      %v730 = vsel %vm579, %v720, %v712
      %v731 = vsel %vm579, %v722, %v714
      %v732 = vsel %vm579, %v724, %v716
      %s733 = scalar_lea.vmem %s3, 2
      %v734 = vld [vmem:[%s733] ss:$8 sm:$0x3]
      %v736 = vlaneseq
      %v737 = vshrl.u32 %v736, 7
      %v738 = vsub.s32 0, %v737
      %v739 = vrot.slane %v734, %v738
      %v740 = vlaneseq
      %v741 = vshrl.u32 %v740, 7
      %v742 = vsub.s32 1, %v741
      %v743 = vrot.slane %v734, %v742
      %v746 = vmul.f32 %v725, %v739
      %v747 = vmul.f32 %v729, %v743
      %v748 = vmul.f32 %v726, %v739
      %v749 = vmul.f32 %v730, %v743
      %v750 = vmul.f32 %v727, %v739
      %v751 = vmul.f32 %v731, %v743
      %v752 = vmul.f32 %v728, %v739
      %v753 = vmul.f32 %v732, %v743
      %v754 = vadd.f32 %v701, %v746
      %v755 = vadd.f32 %v702, %v747
      %v756 = vadd.f32 %v703, %v748
      %v757 = vadd.f32 %v704, %v749
      %v758 = vadd.f32 %v705, %v750
      %v759 = vadd.f32 %v706, %v751
      %v760 = vadd.f32 %v707, %v752
      %v761 = vadd.f32 %v708, %v753
      %v762 = vld [vmem:[%s7] sm:$0xff]
      %v763 = vld [vmem:[%s7 + $0x8] sm:$0xff]
      %v764 = vld [vmem:[%s7 + $0x10] sm:$0xff]
      %v765 = vld [vmem:[%s7 + $0x18] sm:$0xff]
      %767 = vset.pattern.permute.xlu0 0
      %768 = vperm.xlu0 %767, %v762
      %v769 = vpop.permute.xlu0 %768
      %772 = vset.pattern.permute.xlu0 0
      %773 = vperm.xlu0 %772, %v763
      %v774 = vpop.permute.xlu0 %773
      %777 = vset.pattern.permute.xlu0 0
      %778 = vperm.xlu0 %777, %v764
      %v779 = vpop.permute.xlu0 %778
      %782 = vset.pattern.permute.xlu0 0
      %783 = vperm.xlu0 %782, %v765
      %v784 = vpop.permute.xlu0 %783
      %v786 = vmul.f32 %v754, %v769
      %v787 = vmul.f32 %v755, %v769
      %v788 = vmul.f32 %v756, %v774
      %v789 = vmul.f32 %v757, %v774
      %v790 = vmul.f32 %v758, %v779
      %v791 = vmul.f32 %v759, %v779
      %v792 = vmul.f32 %v760, %v784
      %v793 = vmul.f32 %v761, %v784
      %v794 = vadd.f32 %v609, %v786
      %v795 = vadd.f32 %v610, %v787
      %v796 = vadd.f32 %v611, %v788
      %v797 = vadd.f32 %v612, %v789
      %v798 = vadd.f32 %v613, %v790
      %v799 = vadd.f32 %v614, %v791
      %v800 = vadd.f32 %v615, %v792
      %v801 = vadd.f32 %v616, %v793
      %v802 = vrot.slane %v478, 1
      %v803 = vrot.slane %v479, 1
      %v804 = vrot.slane %v480, 1
      %v805 = vrot.slane %v481, 1
      %v806 = vrot.slane %v482, 1
      %v807 = vrot.slane %v483, 1
      %v808 = vrot.slane %v484, 1
      %v809 = vrot.slane %v485, 1
      %vm810 = vcmp.lt.s32.totalorder %v626, 7
      %v811 = vsel %vm810, %v806, %v808
      %v812 = vsel %vm810, %v807, %v809
      %v813 = vsel %vm810, %v804, %v806
      %v814 = vsel %vm810, %v805, %v807
      %v815 = vsel %vm810, %v802, %v804
      %v816 = vsel %vm810, %v803, %v805
      %v817 = vsel %vm810, %v808, %v802
      %v818 = vsel %vm810, %v809, %v803
      %s819 = scalar_lea.vmem %s3, 7
      %v820 = vld [vmem:[%s819] ss:$8 sm:$0x3]
      %v822 = vlaneseq
      %v823 = vshrl.u32 %v822, 7
      %v824 = vsub.s32 0, %v823
      %v825 = vrot.slane %v820, %v824
      %v826 = vlaneseq
      %v827 = vshrl.u32 %v826, 7
      %v828 = vsub.s32 1, %v827
      %v829 = vrot.slane %v820, %v828
      %v832 = vmul.f32 %v815, %v825
      %v833 = vmul.f32 %v816, %v829
      %v834 = vmul.f32 %v813, %v825
      %v835 = vmul.f32 %v814, %v829
      %v836 = vmul.f32 %v811, %v825
      %v837 = vmul.f32 %v812, %v829
      %v838 = vmul.f32 %v817, %v825
      %v839 = vmul.f32 %v818, %v829
      %840 = vrot.lane.b32.xlu0 %v815, 16
      %v841 = vpop.permute.xlu0 %840
      %842 = vrot.lane.b32.xlu0 %v813, 16
      %v843 = vpop.permute.xlu0 %842
      %844 = vrot.lane.b32.xlu0 %v811, 16
      %v845 = vpop.permute.xlu0 %844
      %846 = vrot.lane.b32.xlu0 %v817, 16
      %v847 = vpop.permute.xlu0 %846
      %848 = vrot.lane.b32.xlu0 %v816, 16
      %v849 = vpop.permute.xlu0 %848
      %850 = vrot.lane.b32.xlu0 %v814, 16
      %v851 = vpop.permute.xlu0 %850
      %852 = vrot.lane.b32.xlu0 %v812, 16
      %v853 = vpop.permute.xlu0 %852
      %854 = vrot.lane.b32.xlu0 %v818, 16
      %v855 = vpop.permute.xlu0 %854
      %v856 = vsel %vm525, %v841, %v849
      %v857 = vsel %vm525, %v843, %v851
      %v858 = vsel %vm525, %v845, %v853
      %v859 = vsel %vm525, %v847, %v855
      %v860 = vsel %vm525, %v849, %v841
      %v861 = vsel %vm525, %v851, %v843
      %v862 = vsel %vm525, %v853, %v845
      %v863 = vsel %vm525, %v855, %v847
      %s864 = scalar_lea.vmem %s3, 6
      %v865 = vld [vmem:[%s864] ss:$8 sm:$0x3]
      %v867 = vlaneseq
      %v868 = vshrl.u32 %v867, 7
      %v869 = vsub.s32 0, %v868
      %v870 = vrot.slane %v865, %v869
      %v871 = vlaneseq
      %v872 = vshrl.u32 %v871, 7
      %v873 = vsub.s32 1, %v872
      %v874 = vrot.slane %v865, %v873
      %v877 = vmul.f32 %v860, %v870
      %v878 = vmul.f32 %v856, %v874
      %v879 = vmul.f32 %v861, %v870
      %v880 = vmul.f32 %v857, %v874
      %v881 = vmul.f32 %v862, %v870
      %v882 = vmul.f32 %v858, %v874
      %v883 = vmul.f32 %v863, %v870
      %v884 = vmul.f32 %v859, %v874
      %v885 = vadd.f32 %v832, %v877
      %v886 = vadd.f32 %v833, %v878
      %v887 = vadd.f32 %v834, %v879
      %v888 = vadd.f32 %v835, %v880
      %v889 = vadd.f32 %v836, %v881
      %v890 = vadd.f32 %v837, %v882
      %v891 = vadd.f32 %v838, %v883
      %v892 = vadd.f32 %v839, %v884
      %893 = vrot.lane.b32.xlu0 %v815, 112
      %v894 = vpop.permute.xlu0 %893
      %895 = vrot.lane.b32.xlu0 %v813, 112
      %v896 = vpop.permute.xlu0 %895
      %897 = vrot.lane.b32.xlu0 %v811, 112
      %v898 = vpop.permute.xlu0 %897
      %899 = vrot.lane.b32.xlu0 %v817, 112
      %v900 = vpop.permute.xlu0 %899
      %901 = vrot.lane.b32.xlu0 %v816, 112
      %v902 = vpop.permute.xlu0 %901
      %903 = vrot.lane.b32.xlu0 %v814, 112
      %v904 = vpop.permute.xlu0 %903
      %905 = vrot.lane.b32.xlu0 %v812, 112
      %v906 = vpop.permute.xlu0 %905
      %907 = vrot.lane.b32.xlu0 %v818, 112
      %v908 = vpop.permute.xlu0 %907
      %v909 = vsel %vm579, %v894, %v902
      %v910 = vsel %vm579, %v896, %v904
      %v911 = vsel %vm579, %v898, %v906
      %v912 = vsel %vm579, %v900, %v908
      %v913 = vsel %vm579, %v902, %v894
      %v914 = vsel %vm579, %v904, %v896
      %v915 = vsel %vm579, %v906, %v898
      %v916 = vsel %vm579, %v908, %v900
      %s917 = scalar_lea.vmem %s3, 16
      %v918 = vld [vmem:[%s917] ss:$8 sm:$0x3]
      %v920 = vlaneseq
      %v921 = vshrl.u32 %v920, 7
      %v922 = vsub.s32 0, %v921
      %v923 = vrot.slane %v918, %v922
      %v924 = vlaneseq
      %v925 = vshrl.u32 %v924, 7
      %v926 = vsub.s32 1, %v925
      %v927 = vrot.slane %v918, %v926
      %v930 = vmul.f32 %v909, %v923
      %v931 = vmul.f32 %v913, %v927
      %v932 = vmul.f32 %v910, %v923
      %v933 = vmul.f32 %v914, %v927
      %v934 = vmul.f32 %v911, %v923
      %v935 = vmul.f32 %v915, %v927
      %v936 = vmul.f32 %v912, %v923
      %v937 = vmul.f32 %v916, %v927
      %v938 = vadd.f32 %v885, %v930
      %v939 = vadd.f32 %v886, %v931
      %v940 = vadd.f32 %v887, %v932
      %v941 = vadd.f32 %v888, %v933
      %v942 = vadd.f32 %v889, %v934
      %v943 = vadd.f32 %v890, %v935
      %v944 = vadd.f32 %v891, %v936
      %v945 = vadd.f32 %v892, %v937
      %v946 = vld [vmem:[%s8] sm:$0xff]
      %v947 = vld [vmem:[%s8 + $0x8] sm:$0xff]
      %v948 = vld [vmem:[%s8 + $0x10] sm:$0xff]
      %v949 = vld [vmem:[%s8 + $0x18] sm:$0xff]
      %951 = vset.pattern.permute.xlu0 0
      %952 = vperm.xlu0 %951, %v946
      %v953 = vpop.permute.xlu0 %952
      %956 = vset.pattern.permute.xlu0 0
      %957 = vperm.xlu0 %956, %v947
      %v958 = vpop.permute.xlu0 %957
      %961 = vset.pattern.permute.xlu0 0
      %962 = vperm.xlu0 %961, %v948
      %v963 = vpop.permute.xlu0 %962
      %966 = vset.pattern.permute.xlu0 0
      %967 = vperm.xlu0 %966, %v949
      %v968 = vpop.permute.xlu0 %967
      %v970 = vmul.f32 %v938, %v953
      %v971 = vmul.f32 %v939, %v953
      %v972 = vmul.f32 %v940, %v958
      %v973 = vmul.f32 %v941, %v958
      %v974 = vmul.f32 %v942, %v963
      %v975 = vmul.f32 %v943, %v963
      %v976 = vmul.f32 %v944, %v968
      %v977 = vmul.f32 %v945, %v968
      %v978 = vadd.f32 %v794, %v970
      %v979 = vadd.f32 %v795, %v971
      %v980 = vadd.f32 %v796, %v972
      %v981 = vadd.f32 %v797, %v973
      %v982 = vadd.f32 %v798, %v974
      %v983 = vadd.f32 %v799, %v975
      %v984 = vadd.f32 %v800, %v976
      %v985 = vadd.f32 %v801, %v977
      %v986 = vld [vmem:[%s4] sm:$0x3]
      %v988 = vlaneseq
      %v989 = vshrl.u32 %v988, 7
      %v990 = vsub.s32 0, %v989
      %v991 = vrot.slane %v986, %v990
      %v992 = vlaneseq
      %v993 = vshrl.u32 %v992, 7
      %v994 = vsub.s32 1, %v993
      %v995 = vrot.slane %v986, %v994
      %v998 = vadd.f32 %v978, %v991
      %v999 = vadd.f32 %v979, %v995
      %v1000 = vadd.f32 %v980, %v991
      %v1001 = vadd.f32 %v981, %v995
      %v1002 = vadd.f32 %v982, %v991
      %v1003 = vadd.f32 %v983, %v995
      %v1004 = vadd.f32 %v984, %v991
      %v1005 = vadd.f32 %v985, %v995
      %v1006 = vmax.f32 %v998, 0.0
      %v1007 = vmax.f32 %v999, 0.0
      %v1008 = vmax.f32 %v1000, 0.0
      %v1009 = vmax.f32 %v1001, 0.0
      %v1010 = vmax.f32 %v1002, 0.0
      %v1011 = vmax.f32 %v1003, 0.0
      %v1012 = vmax.f32 %v1004, 0.0
      %v1013 = vmax.f32 %v1005, 0.0
      %v1014 = vmin.f32 %v1006, 6.0
      %v1015 = vmin.f32 %v1007, 6.0
      %v1016 = vmin.f32 %v1008, 6.0
      %v1017 = vmin.f32 %v1009, 6.0
      %v1018 = vmin.f32 %v1010, 6.0
      %v1019 = vmin.f32 %v1011, 6.0
      %v1020 = vmin.f32 %v1012, 6.0
      %v1021 = vmin.f32 %v1013, 6.0
      %v1022 = vld [vmem:[%s5] sm:$0xff]
      %v1023 = vld [vmem:[%s5 + $0x8] sm:$0xff]
      %v1024 = vld [vmem:[%s5 + $0x10] sm:$0xff]
      %v1025 = vld [vmem:[%s5 + $0x18] sm:$0xff]
      %v1026 = vld [vmem:[%s5 + $0x20] sm:$0xff]
      %v1027 = vld [vmem:[%s5 + $0x28] sm:$0xff]
      %v1028 = vld [vmem:[%s5 + $0x30] sm:$0xff]
      %v1029 = vld [vmem:[%s5 + $0x38] sm:$0xff]
      %v1030 = vld [vmem:[%s5 + $0x40] sm:$0xff]
      %v1031 = vld [vmem:[%s5 + $0x48] sm:$0xff]
      %v1032 = vld [vmem:[%s5 + $0x50] sm:$0xff]
      %v1033 = vld [vmem:[%s5 + $0x58] sm:$0xff]
      %v1034 = vld [vmem:[%s5 + $0x60] sm:$0xff]
      %v1035 = vld [vmem:[%s5 + $0x68] sm:$0xff]
      %v1036 = vld [vmem:[%s5 + $0x70] sm:$0xff]
      %v1037 = vld [vmem:[%s5 + $0x78] sm:$0xff]
      %v1038 = vld [vmem:[%s5 + $0x80] sm:$0xff]
      %v1039 = vld [vmem:[%s5 + $0x88] sm:$0xff]
      %v1040 = vld [vmem:[%s5 + $0x90] sm:$0xff]
      %v1041 = vld [vmem:[%s5 + $0x98] sm:$0xff]
      %v1042 = vld [vmem:[%s5 + $0xa0] sm:$0xff]
      %v1043 = vld [vmem:[%s5 + $0xa8] sm:$0xff]
      %v1044 = vld [vmem:[%s5 + $0xb0] sm:$0xff]
      %v1045 = vld [vmem:[%s5 + $0xb8] sm:$0xff]
      %v1046 = vld [vmem:[%s5 + $0xc0] sm:$0xff]
      %v1047 = vld [vmem:[%s5 + $0xc8] sm:$0xff]
      %v1048 = vld [vmem:[%s5 + $0xd0] sm:$0xff]
      %v1049 = vld [vmem:[%s5 + $0xd8] sm:$0xff]
      %v1050 = vld [vmem:[%s5 + $0xe0] sm:$0xff]
      %v1051 = vld [vmem:[%s5 + $0xe8] sm:$0xff]
      %v1052 = vld [vmem:[%s5 + $0xf0] sm:$0xff]
      %v1053 = vld [vmem:[%s5 + $0xf8] sm:$0xff]
      %v1054 = vld [vmem:[%s6] sm:$0x1]
      %v1056 = vlaneseq
      %v1057 = vshrl.u32 %v1056, 7
      %v1058 = vsub.s32 0, %v1057
      %v1059 = vrot.slane %v1054, %v1058
      %1061 = vmatprep.subr.mxu0 0.0
      %1062 = vmatpush1.msra.mxu0 %v1037
      %1063 = vmatprep.subr.mxu0 0.0
      %1064 = vmatpush1.msra.mxu0 %v1036
      %1065 = vmatprep.subr.mxu0 0.0
      %1066 = vmatpush1.msra.mxu0 %v1035
      %1067 = vmatprep.subr.mxu0 0.0
      %1068 = vmatpush1.msra.mxu0 %v1034
      %1069 = vmatprep.subr.mxu0 0.0
      %1070 = vmatpush1.msra.mxu0 %v1033
      %1071 = vmatprep.subr.mxu0 0.0
      %1072 = vmatpush1.msra.mxu0 %v1032
      %1073 = vmatprep.subr.mxu0 0.0
      %1074 = vmatpush1.msra.mxu0 %v1031
      %1075 = vmatprep.subr.mxu0 0.0
      %1076 = vmatpush1.msra.mxu0 %v1030
      %1077 = vmatprep.subr.mxu0 0.0
      %1078 = vmatpush1.msra.mxu0 %v1029
      %1079 = vmatprep.subr.mxu0 0.0
      %1080 = vmatpush1.msra.mxu0 %v1028
      %1081 = vmatprep.subr.mxu0 0.0
      %1082 = vmatpush1.msra.mxu0 %v1027
      %1083 = vmatprep.subr.mxu0 0.0
      %1084 = vmatpush1.msra.mxu0 %v1026
      %1085 = vmatprep.subr.mxu0 0.0
      %1086 = vmatpush1.msra.mxu0 %v1025
      %1087 = vmatprep.subr.mxu0 0.0
      %1088 = vmatpush1.msra.mxu0 %v1024
      %1089 = vmatprep.subr.mxu0 0.0
      %1090 = vmatpush1.msra.mxu0 %v1023
      %1091 = vmatprep.subr.mxu0 0.0
      %1092 = vmatpush1.msra.mxu0 %v1022
      %1093 = vmatprep.subr.mxu0 0.0
      %1094 = vmatpush2.msra.mxu0 %v1053
      %1095 = vmatprep.subr.mxu0 0.0
      %1096 = vmatpush2.msra.mxu0 %v1052
      %1097 = vmatprep.subr.mxu0 0.0
      %1098 = vmatpush2.msra.mxu0 %v1051
      %1099 = vmatprep.subr.mxu0 0.0
      %1100 = vmatpush2.msra.mxu0 %v1050
      %1101 = vmatprep.subr.mxu0 0.0
      %1102 = vmatpush2.msra.mxu0 %v1049
      %1103 = vmatprep.subr.mxu0 0.0
      %1104 = vmatpush2.msra.mxu0 %v1048
      %1105 = vmatprep.subr.mxu0 0.0
      %1106 = vmatpush2.msra.mxu0 %v1047
      %1107 = vmatprep.subr.mxu0 0.0
      %1108 = vmatpush2.msra.mxu0 %v1046
      %1109 = vmatprep.subr.mxu0 0.0
      %1110 = vmatpush2.msra.mxu0 %v1045
      %1111 = vmatprep.subr.mxu0 0.0
      %1112 = vmatpush2.msra.mxu0 %v1044
      %1113 = vmatprep.subr.mxu0 0.0
      %1114 = vmatpush2.msra.mxu0 %v1043
      %1115 = vmatprep.subr.mxu0 0.0
      %1116 = vmatpush2.msra.mxu0 %v1042
      %1117 = vmatprep.subr.mxu0 0.0
      %1118 = vmatpush2.msra.mxu0 %v1041
      %1119 = vmatprep.subr.mxu0 0.0
      %1120 = vmatpush2.msra.mxu0 %v1040
      %1121 = vmatprep.subr.mxu0 0.0
      %1122 = vmatpush2.msra.mxu0 %v1039
      %1123 = vmatprep.subr.mxu0 0.0
      %1124 = vmatpush2.msra.mxu0 %v1038
      %1125 = vmatprep.mubr.f32.mxu0 %v1015
      %1126 = vmatmul.mubr.f32.gmra.mxu0 %v1014
      %v1127 = vpop.f32.mrf.mxu0
      %v1128 = vadd.f32 %v1059, %v1127
      %v1129 = vpop.f32.mrf.mxu0
      %1130 = vmatprep.mubr.f32.mxu0 %v1017
      %1131 = vmatmul.mubr.f32.gmra.mxu0 %v1016
      %v1132 = vpop.f32.mrf.mxu0
      %v1133 = vadd.f32 %v1059, %v1132
      %v1134 = vpop.f32.mrf.mxu0
      %1135 = vmatprep.mubr.f32.mxu0 %v1019
      %1136 = vmatmul.mubr.f32.gmra.mxu0 %v1018
      %v1137 = vpop.f32.mrf.mxu0
      %v1138 = vadd.f32 %v1059, %v1137
      %v1139 = vpop.f32.mrf.mxu0
      %1140 = vmatprep.mubr.f32.mxu0 %v1021
      %1141 = vmatmul.mubr.f32.gmra.mxu0 %v1020
      %v1142 = vpop.f32.mrf.mxu0
      %v1143 = vadd.f32 %v1059, %v1142
      %v1144 = vpop.f32.mrf.mxu0
      %1145 = vdwg.mxu0
      %v1146 = vadd.f32 %v1128, %v336
      %v1147 = vadd.f32 %v1133, %v337
      %v1148 = vadd.f32 %v1138, %v338
      %v1149 = vadd.f32 %v1143, %v339
      %1150 = vst.msk [vmem:[%s334] sm:$0xff] %vm368, %v1146
      %1151 = vst.msk [vmem:[%s334 + $0x8] sm:$0xff] %vm368, %v1147
      %1152 = vst.msk [vmem:[%s334 + $0x10] sm:$0xff] %vm368, %v1148
      %1153 = vst.msk [vmem:[%s334 + $0x18] sm:$0xff] %vm368, %v1149
      %s1154 = smul.u32 4, %s20
      %p1155 = scmp.lt.s32.totalorder %s1154, 7
      %s1156 = scalar_select %p1155, %s1154, 7
      %s1157 = smul.addr %s1156, 8
      %s1158 = scalar_lea.vmem %s9, %s1157
      // Predicated region
      $region57: #{_lambda_.1} parent=55 // pred_check
        %p1159 = pneg %p232
      $region58: #{_lambda_.1} parent=55 // pred_check_branch
        %1161 = sbr.rel (%p1159) target = $region60
      $region59: #{_lambda_.1} parent=55 // pred_region
        %s1162 = smul.u32 4, %s20
      $region60: #{_lambda_.1} parent=55 // pred_fallthru
        _
    $region56: #{_lambda_.1} parent=5 // pred_fallthru
      _
    %p1163 = scmp.le.s32.totalorder 2, %s15
    // Predicated region
    $region61: #{_lambda_.1} parent=5 // pred_check
      %p1164 = pneg %p1163
    $region62: #{_lambda_.1} parent=5 // pred_check_branch
      %1166 = sbr.rel (%p1164) target = $region64
    $region63: #{_lambda_.1} parent=5 // pred_region
      %s1167 = ssub.s32 %s15, 2
      // Predicated region
      $region65: #{_lambda_.1} parent=63 // pred_check
        %p1168 = pneg %p238
      $region66: #{_lambda_.1} parent=63 // pred_check_branch
        %1170 = sbr.rel (%p1168) target = $region68
      $region67: #{_lambda_.1} parent=63 // pred_region
        %s1171 = smul.u32 4, %s21
        %p1172 = scmp.lt.s32.totalorder %s1171, 7
        %s1173 = scalar_select %p1172, %s1171, 7
        %s1174 = smul.addr %s1173, 8
        %s1175 = scalar_lea.vmem %s9, %s1174
      $region68: #{_lambda_.1} parent=63 // pred_fallthru
        _
    $region64: #{_lambda_.1} parent=5 // pred_fallthru
      _
  $region6: #{_lambda_.1} parent=0 // loop_footer
    %s19 = sadd.s32 1, %s15
  $region7: #{_lambda_.1} parent=0 // loop_footer_branch
    %14 = sbr.rel target = $region3
  $region8: #{_lambda_.1} parent=0 // loop_exit
    _

</llo_original>
